<compile_context>
chip_gen: v7x
topology: tpu7x:2x2x1
jax: 0.10.0
libtpu: 0.0.40
codegen_flags: <defaults>
</compile_context>

<pallas_src>
import functools

import jax
import jax.numpy as jnp
from jax.experimental import pallas as pl
from jax.experimental.pallas import tpu as pltpu


def _early_reward_loss_kernel(logp_ref, deltas_ref, y_ref, out_ref, *,
                              n_valid, alpha, epsilon):
    TN, T, C = logp_ref.shape

    # In-kernel upcast right after the loads (inputs may be bf16 in HBM; all
    # arithmetic is done in f32, which also keeps v5e's VPU/EUP happy).
    logp = logp_ref[...].astype(jnp.float32)      # (TN, T, C)
    deltas = deltas_ref[...].astype(jnp.float32)  # (TN, T)
    y = y_ref[...]                                # (TN, T) int32

    # ---- probability_correct_class: one-hot select + lane reduce ----------
    class_ids = jax.lax.broadcasted_iota(jnp.int32, (TN, T, C), 2)
    logp_y = jnp.sum(jnp.where(class_ids == y[:, :, None], logp, 0.0),
                     axis=2)                       # (TN, T)

    # ---- calculate_probability_making_decision (Eq. 3), vectorized --------
    # budget_t = prod_{s=1..t} (1 - deltas[:, s]);
    # Pt[:, t] = deltas[:, t+1] * budget_t  (t < T-1),  Pt[:, T-1] = budget_{T-1}
    col = jax.lax.broadcasted_iota(jnp.int32, (TN, T), 1)
    g = jnp.where(col == 0, 1.0, 1.0 - deltas)     # multiplicative identity at t=0
    budget = g
    off = 1
    while off < T:                                 # ceil(log2(T)) vector steps
        shifted = jnp.concatenate(
            [jnp.ones((TN, off), jnp.float32), budget[:, :T - off]], axis=1)
        budget = budget * shifted
        off *= 2
    if T > 1:
        d_next = jnp.concatenate(
            [deltas[:, 1:], jnp.zeros((TN, 1), jnp.float32)], axis=1)
    else:
        d_next = jnp.zeros_like(deltas)
    Pt = jnp.where(col == T - 1, budget, d_next * budget) + (epsilon / T)

    # ---- earliness reward and classification (NLL) loss --------------------
    t_f = col.astype(jnp.float32)                  # reuse the iota
    w = 1.0 - t_f * (1.0 / T)                      # (1 - t/T), built once
    earliness = jnp.sum(Pt * jnp.exp(logp_y) * w, axis=1, keepdims=True)  # (TN,1)
    cls = jnp.sum((-logp_y) * Pt, axis=1, keepdims=True)                  # (TN,1)
    per_row = alpha * cls - (1.0 - alpha) * earliness                     # (TN,1)

    # Mask batch-padding rows of the final (partial) block.
    row = (pl.program_id(0) * TN
           + jax.lax.broadcasted_iota(jnp.int32, (TN, 1), 0))
    per_row = jnp.where(row < n_valid, per_row, 0.0)

    # Lane-dense partial-sum output: value in lane 0 of a (1, 1, 128) tile.
    partial = jnp.sum(per_row)
    lane = jax.lax.broadcasted_iota(jnp.int32, (1, 1, 128), 2)
    out_ref[...] = jnp.where(lane == 0, partial, 0.0)


def _round_up(x, m):
    return ((x + m - 1) // m) * m


def early_reward_loss(log_class_probabilities, probability_stopping, y_true,
                      alpha=0.5, epsilon=10):
    """Pallas TPU implementation of EarlyRewardLoss.forward (return_stats=False)."""
    N, T, C = log_class_probabilities.shape
    y_true = y_true.astype(jnp.int32)  # tiny (N, T) array

    # Batch tile: trailing (T, C) dims are kept whole (block dims equal the
    # full array dims, so no (8,128) constraint on them).  TN is a multiple of
    # 8 (required by the 2-D (TN, T) blocks) unless N itself is tiny, and is
    # sized so the double-buffered input tile plus its f32 in-kernel copies
    # stay well inside scoped VMEM on v5e/v6e/v7x.
    padded_row_bytes = _round_up(T, 8) * _round_up(C, 128) * 4  # f32 equivalent
    if N <= 8:
        tn = N
    else:
        tn = min(N, 1024, max(8, (2 * 1024 * 1024) // padded_row_bytes))
        tn = max(8, (tn // 8) * 8)
    num_blocks = pl.cdiv(N, tn)

    kernel = functools.partial(_early_reward_loss_kernel, n_valid=N,
                               alpha=float(alpha), epsilon=float(epsilon))
    partials = pl.pallas_call(
        kernel,
        out_shape=jax.ShapeDtypeStruct((num_blocks, 1, 128), jnp.float32),
        grid=(num_blocks,),
        in_specs=[
            pl.BlockSpec((tn, T, C), lambda i: (i, 0, 0)),  # log class probs
            pl.BlockSpec((tn, T), lambda i: (i, 0)),        # stopping probs
            pl.BlockSpec((tn, T), lambda i: (i, 0)),        # targets
        ],
        out_specs=pl.BlockSpec((1, 1, 128), lambda i: (i, 0, 0)),
        compiler_params=pltpu.CompilerParams(
            dimension_semantics=("parallel",),
            vmem_limit_bytes=32 * 1024 * 1024),
    )(log_class_probabilities, probability_stopping, y_true)

    # Per-block partial sums live in lane 0 (other lanes are zero); finish the
    # batch mean / alpha combination with one tiny JAX reduction.
    return jnp.sum(partials) / N


def _reference_loss(logp, deltas, y, alpha=0.5, epsilon=10):
    """Pure-JAX reference mirroring the PyTorch module, for verification."""
    N, T, C = logp.shape
    budget = jnp.ones((N,), jnp.float32)
    cols = []
    for t in range(1, T):
        pt = deltas[:, t] * budget
        budget = budget - pt
        cols.append(pt)
    cols.append(budget)
    Pt = jnp.stack(cols, axis=-1) + epsilon / T
    logp_y = jnp.take_along_axis(logp, y[..., None], axis=-1)[..., 0]
    t_idx = jnp.broadcast_to(jnp.arange(T, dtype=jnp.float32), (N, T))
    earliness_reward = (Pt * jnp.exp(logp_y) * (1 - t_idx / T)).sum(1).mean(0)
    classification_loss = ((-logp_y) * Pt).sum(1).mean(0)
    return alpha * classification_loss - (1 - alpha) * earliness_reward


def _make_inputs(key, N, T, C):
    k1, k2, k3 = jax.random.split(key, 3)
    logits = jax.random.normal(k1, (N, T, C), dtype=jnp.float32)
    log_class_probabilities = jax.nn.log_softmax(logits, axis=-1)
    probability_stopping = jax.nn.sigmoid(
        jax.random.normal(k2, (N, T), dtype=jnp.float32))
    y_true = jax.random.randint(k3, (N, T), 0, C, dtype=jnp.int32)
    return log_class_probabilities, probability_stopping, y_true


if __name__ == "__main__":
    key = jax.random.PRNGKey(0)
    k_a, k_b = jax.random.split(key)

    # Small base case (single block).
    logp, stop, y = _make_inputs(k_a, N=2, T=8, C=32)
    loss = jax.block_until_ready(early_reward_loss(logp, stop, y,
                                                   alpha=0.5, epsilon=10))
    ref = _reference_loss(logp, stop, y, alpha=0.5, epsilon=10)
    assert jnp.allclose(loss, ref, atol=1e-5, rtol=1e-5), (loss, ref)

    # Larger case exercising the batch grid, a partial final block with row
    # masking, non-power-of-two T and odd C.
    logp, stop, y = _make_inputs(k_b, N=20, T=10, C=7)
    loss = jax.block_until_ready(early_reward_loss(logp, stop, y,
                                                   alpha=0.4, epsilon=10))
    ref = _reference_loss(logp, stop, y, alpha=0.4, epsilon=10)
    assert jnp.allclose(loss, ref, atol=1e-5, rtol=1e-5), (loss, ref)

    print("KERNEL_OK")
</pallas_src>

<mosaic_0001>
module attributes {stable_mosaic.version = 11 : i64} {
  func.func @_early_reward_loss_kernel(%arg0: i32, %arg1: memref<2x8x32xf32, #tpu.memory_space<vmem>>, %arg2: memref<2x8xf32, #tpu.memory_space<vmem>>, %arg3: memref<2x8xi32, #tpu.memory_space<vmem>>, %arg4: memref<1x1x128xf32, #tpu.memory_space<vmem>>) attributes {dimension_semantics = [#tpu.dimension_semantics<parallel>], iteration_bounds = array<i64: 1>, scalar_prefetch = 0 : i64, scratch_operands = 0 : i64, tpu.core_type = #tpu.core_type<tc>, window_params = [{transform_indices = @transform_0, window_bounds = array<i64: 2, 8, 32>}, {transform_indices = @transform_1, window_bounds = array<i64: 2, 8>}, {transform_indices = @transform_2, window_bounds = array<i64: 2, 8>}, {transform_indices = @transform_3, window_bounds = array<i64: 1, 1, 128>}]} {
    %c0 = arith.constant 0 : index
    %c0_0 = arith.constant 0 : index
    %c0_1 = arith.constant 0 : index
    %0 = vector.load %arg1[%c0, %c0_0, %c0_1] : memref<2x8x32xf32, #tpu.memory_space<vmem>>, vector<2x8x32xf32>
    %c0_2 = arith.constant 0 : index
    %c0_3 = arith.constant 0 : index
    %1 = vector.load %arg2[%c0_2, %c0_3] : memref<2x8xf32, #tpu.memory_space<vmem>>, vector<2x8xf32>
    %c0_4 = arith.constant 0 : index
    %c0_5 = arith.constant 0 : index
    %2 = vector.load %arg3[%c0_4, %c0_5] : memref<2x8xi32, #tpu.memory_space<vmem>>, vector<2x8xi32>
    %3 = tpu.iota {dimensions = array<i32: 2>} : vector<2x8x32xi32>
    %4 = vector.shape_cast %2 : vector<2x8xi32> to vector<2x8x1xi32>
    %5 = vector.broadcast %4 : vector<2x8x1xi32> to vector<2x8x32xi32>
    %6 = arith.cmpi eq, %3, %5 : vector<2x8x32xi32>
    %cst = arith.constant 0.000000e+00 : f32
    %7 = vector.broadcast %cst : f32 to vector<2x8x32xf32>
    %8 = arith.select %6, %0, %7 : vector<2x8x32xi1>, vector<2x8x32xf32>
    %cst_6 = arith.constant dense<0.000000e+00> : vector<2x8xf32>
    %9 = vector.multi_reduction <add>, %8, %cst_6 [2] : vector<2x8x32xf32> to vector<2x8xf32>
    %10 = tpu.iota {dimensions = array<i32: 1>} : vector<2x8xi32>
    %c0_i32 = arith.constant 0 : i32
    %11 = vector.broadcast %c0_i32 : i32 to vector<2x8xi32>
    %12 = arith.cmpi eq, %10, %11 : vector<2x8xi32>
    %cst_7 = arith.constant 1.000000e+00 : f32
    %13 = vector.broadcast %cst_7 : f32 to vector<2x8xf32>
    %14 = arith.subf %13, %1 : vector<2x8xf32>
    %cst_8 = arith.constant 1.000000e+00 : f32
    %15 = vector.broadcast %cst_8 : f32 to vector<2x8xf32>
    %16 = arith.select %12, %15, %14 : vector<2x8xi1>, vector<2x8xf32>
    %cst_9 = arith.constant 1.000000e+00 : f32
    %17 = vector.broadcast %cst_9 : f32 to vector<2x1xf32>
    %18 = vector.extract_strided_slice %16 {offsets = [0, 0], sizes = [2, 7], strides = [1, 1]} : vector<2x8xf32> to vector<2x7xf32>
    %19 = tpu.concatenate %17, %18 in 1 : vector<2x1xf32>, vector<2x7xf32> -> vector<2x8xf32>
    %20 = arith.mulf %16, %19 : vector<2x8xf32>
    %cst_10 = arith.constant 1.000000e+00 : f32
    %21 = vector.broadcast %cst_10 : f32 to vector<2x2xf32>
    %22 = vector.extract_strided_slice %20 {offsets = [0, 0], sizes = [2, 6], strides = [1, 1]} : vector<2x8xf32> to vector<2x6xf32>
    %23 = tpu.concatenate %21, %22 in 1 : vector<2x2xf32>, vector<2x6xf32> -> vector<2x8xf32>
    %24 = arith.mulf %20, %23 : vector<2x8xf32>
    %cst_11 = arith.constant 1.000000e+00 : f32
    %25 = vector.broadcast %cst_11 : f32 to vector<2x4xf32>
    %26 = vector.extract_strided_slice %24 {offsets = [0, 0], sizes = [2, 4], strides = [1, 1]} : vector<2x8xf32> to vector<2x4xf32>
    %27 = tpu.concatenate %25, %26 in 1 : vector<2x4xf32>, vector<2x4xf32> -> vector<2x8xf32>
    %28 = arith.mulf %24, %27 : vector<2x8xf32>
    %29 = vector.extract_strided_slice %1 {offsets = [0, 1], sizes = [2, 7], strides = [1, 1]} : vector<2x8xf32> to vector<2x7xf32>
    %cst_12 = arith.constant 0.000000e+00 : f32
    %30 = vector.broadcast %cst_12 : f32 to vector<2x1xf32>
    %31 = tpu.concatenate %29, %30 in 1 : vector<2x7xf32>, vector<2x1xf32> -> vector<2x8xf32>
    %c7_i32 = arith.constant 7 : i32
    %32 = vector.broadcast %c7_i32 : i32 to vector<2x8xi32>
    %33 = arith.cmpi eq, %10, %32 : vector<2x8xi32>
    %34 = arith.mulf %31, %28 : vector<2x8xf32>
    %35 = arith.select %33, %28, %34 : vector<2x8xi1>, vector<2x8xf32>
    %cst_13 = arith.constant 1.250000e+00 : f32
    %36 = vector.broadcast %cst_13 : f32 to vector<2x8xf32>
    %37 = arith.addf %35, %36 : vector<2x8xf32>
    %38 = arith.sitofp %10 : vector<2x8xi32> to vector<2x8xf32>
    %cst_14 = arith.constant 1.250000e-01 : f32
    %39 = vector.broadcast %cst_14 : f32 to vector<2x8xf32>
    %40 = arith.mulf %38, %39 : vector<2x8xf32>
    %cst_15 = arith.constant 1.000000e+00 : f32
    %41 = vector.broadcast %cst_15 : f32 to vector<2x8xf32>
    %42 = arith.subf %41, %40 : vector<2x8xf32>
    %43 = math.exp %9 : vector<2x8xf32>
    %44 = arith.mulf %37, %43 : vector<2x8xf32>
    %45 = arith.mulf %44, %42 : vector<2x8xf32>
    %cst_16 = arith.constant dense<0.000000e+00> : vector<2xf32>
    %46 = vector.multi_reduction <add>, %45, %cst_16 [1] : vector<2x8xf32> to vector<2xf32>
    %47 = vector.shape_cast %46 : vector<2xf32> to vector<2x1xf32>
    %cst_17 = arith.constant 0.000000e+00 : f32
    %48 = vector.broadcast %cst_17 : f32 to vector<2x8xf32>
    %49 = arith.subf %48, %9 : vector<2x8xf32>
    %50 = arith.mulf %49, %37 : vector<2x8xf32>
    %cst_18 = arith.constant dense<0.000000e+00> : vector<2xf32>
    %51 = vector.multi_reduction <add>, %50, %cst_18 [1] : vector<2x8xf32> to vector<2xf32>
    %52 = vector.shape_cast %51 : vector<2xf32> to vector<2x1xf32>
    %cst_19 = arith.constant 5.000000e-01 : f32
    %53 = vector.broadcast %cst_19 : f32 to vector<2x1xf32>
    %54 = arith.mulf %53, %52 : vector<2x1xf32>
    %cst_20 = arith.constant 5.000000e-01 : f32
    %55 = vector.broadcast %cst_20 : f32 to vector<2x1xf32>
    %56 = arith.mulf %55, %47 : vector<2x1xf32>
    %57 = arith.subf %54, %56 : vector<2x1xf32>
    %c2_i32 = arith.constant 2 : i32
    %58 = arith.muli %arg0, %c2_i32 : i32
    %59 = tpu.iota {dimensions = array<i32: 0>} : vector<2x1xi32>
    %60 = vector.broadcast %58 : i32 to vector<2x1xi32>
    %61 = arith.addi %60, %59 : vector<2x1xi32>
    %c2_i32_21 = arith.constant 2 : i32
    %62 = vector.broadcast %c2_i32_21 : i32 to vector<2x1xi32>
    %63 = arith.cmpi slt, %61, %62 : vector<2x1xi32>
    %cst_22 = arith.constant 0.000000e+00 : f32
    %64 = vector.broadcast %cst_22 : f32 to vector<2x1xf32>
    %65 = arith.select %63, %57, %64 : vector<2x1xi1>, vector<2x1xf32>
    %66 = vector.shape_cast %65 : vector<2x1xf32> to vector<1x2x1xf32>
    %cst_23 = arith.constant dense<0.000000e+00> : vector<1xf32>
    %67 = vector.multi_reduction <add>, %66, %cst_23 [1, 2] : vector<1x2x1xf32> to vector<1xf32>
    %68 = vector.shape_cast %67 : vector<1xf32> to vector<1x1x1xf32>
    %69 = vector.extract %68[0, 0, 0] : f32 from vector<1x1x1xf32>
    %70 = tpu.iota {dimensions = array<i32: 2>} : vector<1x1x128xi32>
    %c0_i32_24 = arith.constant 0 : i32
    %71 = vector.broadcast %c0_i32_24 : i32 to vector<1x1x128xi32>
    %72 = arith.cmpi eq, %70, %71 : vector<1x1x128xi32>
    %cst_25 = arith.constant 0.000000e+00 : f32
    %73 = vector.broadcast %69 : f32 to vector<1x1x128xf32>
    %74 = vector.broadcast %cst_25 : f32 to vector<1x1x128xf32>
    %75 = arith.select %72, %73, %74 : vector<1x1x128xi1>, vector<1x1x128xf32>
    %c0_26 = arith.constant 0 : index
    %c0_27 = arith.constant 0 : index
    %c0_28 = arith.constant 0 : index
    %76 = vector.load %arg4[%c0_26, %c0_27, %c0_28] : memref<1x1x128xf32, #tpu.memory_space<vmem>>, vector<1x1x128xf32>
    tpu.vector_store %arg4[%c0_26, %c0_27, %c0_28], %75 {strides = array<i32>} : memref<1x1x128xf32, #tpu.memory_space<vmem>>, vector<1x1x128xf32>,
    return
  }
  func.func @transform_0(%arg0: i32) -> (i32, i32, i32) {
    %c0_i32 = arith.constant 0 : i32
    %c0_i32_0 = arith.constant 0 : i32
    %c0_i32_1 = arith.constant 0 : i32
    return %arg0, %c0_i32, %c0_i32_0 : i32, i32, i32
  }
  func.func @transform_1(%arg0: i32) -> (i32, i32) {
    %c0_i32 = arith.constant 0 : i32
    %c0_i32_0 = arith.constant 0 : i32
    return %arg0, %c0_i32 : i32, i32
  }
  func.func @transform_2(%arg0: i32) -> (i32, i32) {
    %c0_i32 = arith.constant 0 : i32
    %c0_i32_0 = arith.constant 0 : i32
    return %arg0, %c0_i32 : i32, i32
  }
  func.func @transform_3(%arg0: i32) -> (i32, i32, i32) {
    %c0_i32 = arith.constant 0 : i32
    %c0_i32_0 = arith.constant 0 : i32
    %c0_i32_1 = arith.constant 0 : i32
    return %arg0, %c0_i32, %c0_i32_0 : i32, i32, i32
  }
}

</mosaic_0001>

<llo_original>
// kernel: tpu_custom_call.1
$region0: #{tpu_custom_call.1}
  #allocation0 [shape = 'u32[]', space=smem, size = 0x4, offset = 0x4, fixed_abs, tag = 'smem constant byte address 0x4 - core index']
  #allocation1 [shape = 'u32[144,128]{1,0:T(1,128)}', space=vmem, size = 0x12000, scoped, tag = 'internal scratch']
  %s0 = inlined_call_operand.hbm [shape: f32[2,8,32], index: 0, kind: input, shape index: {}]
  %s1 = inlined_call_operand.vmem [shape: f32[2,8], index: 1, kind: input, shape index: {}]
  %s2 = inlined_call_operand.vmem [shape: s32[2,8], index: 2, kind: input, shape index: {}]
  %s3 = inlined_call_operand.hbm [shape: f32[1,1,128], index: 3, kind: output, shape index: {}]
  %s4 = sld [smem:[#allocation0]]
  $region26: #{tpu_custom_call.1} parent=0
    _
  %s6 = ssub.s32 1, %s4
  %s7 = scalar_select 0, %s6, %s4
  $region1: #{tpu_custom_call.1} parent=0
    #allocation2 [shape = 'u8[8192]{0}', space=vmem, size = 0x2000, scoped, tag = 'input window, operand 0, single buffered']
    #allocation3 [shape = 's32[1]{0}', space=sflag, size = 0x4, scoped, tag = 'scoped memory for tpu_custom_call.1']
    #allocation4 [shape = 's32[1]{0}', space=sflag, size = 0x4, scoped, tag = 'scoped memory for tpu_custom_call.1']
    #allocation5 [shape = 'u8[512]{0}', space=vmem, size = 0x400, scoped, tag = 'output window, operand 0, single buffered']
    %8 = vsyncpa [#allocation3], 0
    %9 = vsyncpa [#allocation4], 0
    // Predicated region
    $region2: #{tpu_custom_call.1} parent=1 // pred_check
      _
    $region3: #{tpu_custom_call.1} parent=1 // pred_check_branch
      %11 = sbr.rel (0) target = $region5
    $region4: #{tpu_custom_call.1} parent=1 // pred_region
      %s13 = ssub.s32 256, 256
      %14 = vsyncadd [#allocation3], %s13
      %s15 = sshll.u32 [#allocation2], 4
      %s16 = int_to_ptr.vmem [resolvable:$true] %s15
      %21 = dma.hbm_to_vmem [thread:$0]  %s0, 256, %s16, [#allocation3], 128, 128, 8
    $region5: #{tpu_custom_call.1} parent=1 // pred_fallthru
      _
    // Predicated region
    $region6: #{tpu_custom_call.1} parent=1 // pred_check
      _
    $region7: #{tpu_custom_call.1} parent=1 // pred_check_branch
      %23 = sbr.rel (0) target = $region9
    $region8: #{tpu_custom_call.1} parent=1 // pred_region
      _
    $region9: #{tpu_custom_call.1} parent=1 // pred_fallthru
      _
    // Predicated region
    $region10: #{tpu_custom_call.1} parent=1 // pred_check
      _
    $region11: #{tpu_custom_call.1} parent=1 // pred_check_branch
      %25 = sbr.rel (0) target = $region13
    $region12: #{tpu_custom_call.1} parent=1 // pred_region
      _
    $region13: #{tpu_custom_call.1} parent=1 // pred_fallthru
      _
    // Predicated region
    $region14: #{tpu_custom_call.1} parent=1 // pred_check
      _
    $region15: #{tpu_custom_call.1} parent=1 // pred_check_branch
      %27 = sbr.rel (0) target = $region17
    $region16: #{tpu_custom_call.1} parent=1 // pred_region
      %28 = dma.done [#allocation3], 256
    $region17: #{tpu_custom_call.1} parent=1 // pred_fallthru
      _
    %v29 = vld [vmem:[#allocation2] sm:$0xff]
    %v30 = vld [vmem:[#allocation2 + $0x8] sm:$0xff]
    %v31 = vld [vmem:[%s1] sm:$0x3]
    %v32 = vld [vmem:[%s2] sm:$0x3]
    %v33 = vlaneseq
    %v34 = vand.u32 %v33, 127
    %v35 = vlaneseq
    %v36 = vshrl.u32 %v35, 7
    %v37 = vsub.s32 0, %v36
    %v38 = vrot.slane %v32, %v37
    %40 = vbcast.lane.b32.xlu0 %v38, 256
    %v41 = vpop.permute.xlu0 %40
    %v42 = vlaneseq
    %v43 = vshrl.u32 %v42, 7
    %v44 = vsub.s32 1, %v43
    %v45 = vrot.slane %v32, %v44
    %47 = vbcast.lane.b32.xlu0 %v45, 256
    %v48 = vpop.permute.xlu0 %47
    %vm49 = vcmp.eq.s32.totalorder %v34, %v41
    %vm50 = vcmp.eq.s32.totalorder %v34, %v48
    %v51 = vsel %vm49, %v29, 0.0
    %v52 = vsel %vm50, %v30, 0.0
    %vm53 = vcmask 261120
    %v54 = vsel %vm53, %v51, 0.0
    %55 = vadd.xlane.f32.xlu0 %v54
    %v56 = vpop.xlane.xlu0 %55
    %v57 = vsel %vm53, %v52, 0.0
    %58 = vadd.xlane.f32.xlu0 %v57
    %v59 = vpop.xlane.xlu0 %58
    %vm60 = vcmp.eq.s32.totalorder %v34, 0
    %v61 = vsub.f32 1.0, %v31
    %v62 = vsel %vm60, 1.0, %v61
    %64 = vrot.lane.b32.xlu0 %v62, 1
    %v65 = vpop.permute.xlu0 %64
    %vm67 = vcmask 7168
    %v68 = vsel %vm67, 1.0, %v65
    %v69 = vmul.f32 %v62, %v68
    %71 = vrot.lane.b32.xlu0 %v69, 2
    %v72 = vpop.permute.xlu0 %71
    %vm74 = vcmask 15360
    %v75 = vsel %vm74, 1.0, %v72
    %v76 = vmul.f32 %v69, %v75
    %78 = vrot.lane.b32.xlu0 %v76, 4
    %v79 = vpop.permute.xlu0 %78
    %vm81 = vcmask 31744
    %v82 = vsel %vm81, 1.0, %v79
    %v83 = vmul.f32 %v76, %v82
    %85 = vrot.lane.b32.xlu0 %v31, 127
    %v86 = vpop.permute.xlu0 %85
    %vm88 = vcmask 56320
    %v89 = vsel %vm88, %v86, 0.0
    %vm90 = vcmp.eq.s32.totalorder %v34, 7
    %v91 = vmul.f32 %v89, %v83
    %v92 = vsel %vm90, %v83, %v91
    %v93 = vadd.f32 %v92, 1.25
    %v94 = vcvt.s32.f32 %v34
    %v95 = vmul.f32 %v94, 0.125
    %v96 = vsub.f32 1.0, %v95
    %v97 = vmul.f32 %v56, 1.442695
    %v98 = vpow.pop %v97
    %v99 = vmul.f32 %v59, 1.442695
    %v100 = vpow.pop %v99
    %v103 = vlaneseq
    %v104 = vshrl.u32 %v103, 7
    %v105 = vsub.s32 %v34, %v104
    %v106 = vrot.slane %v98, %v105
    %v107 = vlaneseq
    %v108 = vshrl.u32 %v107, 7
    %v109 = vsub.s32 %v34, %v108
    %v110 = vrot.slane %v100, %v109
    %vm111 = vcmask 1041409
    %v112 = vsel %vm111, %v110, %v106
    %v114 = vmul.f32 %v93, %v112
    %v115 = vmul.f32 %v114, %v96
    %vm116 = vcmask 58368
    %v117 = vsel %vm116, %v115, 0.0
    %118 = vadd.xlane.f32.xlu0 %v117
    %v119 = vpop.xlane.xlu0 %118
    %v120 = vsub.f32 0.0, %v56
    %v121 = vsub.f32 0.0, %v59
    %v123 = vlaneseq
    %v124 = vshrl.u32 %v123, 7
    %v125 = vsub.s32 0, %v124
    %v126 = vrot.slane %v93, %v125
    %128 = vbcast.lane.b32.xlu0 %v126, 256
    %v129 = vpop.permute.xlu0 %128
    %v130 = vlaneseq
    %v131 = vshrl.u32 %v130, 7
    %v132 = vsub.s32 1, %v131
    %v133 = vrot.slane %v93, %v132
    %135 = vbcast.lane.b32.xlu0 %v133, 256
    %v136 = vpop.permute.xlu0 %135
    %v139 = vmul.f32 %v120, %v129
    %v140 = vmul.f32 %v121, %v136
    %143 = vset.pattern.permute.xlu0 0
    %144 = vperm.xlu0 %143, %v139
    %v145 = vpop.permute.xlu0 %144
    %146 = vset.pattern.permute.xlu0 0
    %147 = vperm.xlu0 %146, %v140
    %v148 = vpop.permute.xlu0 %147
    %v149 = vlaneseq
    %v150 = vshrl.u32 %v149, 7
    %v151 = vsub.s32 %v34, %v150
    %v152 = vrot.slane %v145, %v151
    %v153 = vlaneseq
    %v154 = vshrl.u32 %v153, 7
    %v155 = vsub.s32 %v34, %v154
    %v156 = vrot.slane %v148, %v155
    %v157 = vsel %vm111, %v156, %v152
    %v159 = vsel %vm116, %v157, 0.0
    %160 = vadd.xlane.f32.xlu0 %v159
    %v161 = vpop.xlane.xlu0 %160
    %v162 = vmul.f32 %v161, 0.5
    %v163 = vmul.f32 %v119, 0.5
    %v164 = vsub.f32 %v162, %v163
    %s165 = smul.u32 0, 2
    %v166 = vlaneseq
    %v167 = vshrl.u32 %v166, 7
    %v168 = vstv %s165
    %v169 = vadd.s32 %v168, %v167
    %vm170 = vcmp.lt.s32.totalorder %v169, 2
    %v171 = vsel %vm170, %v164, 0.0
    %vm172 = vcmask 1024
    %v173 = vsel %vm172, %v171, 0.0
    %174 = vadd.xlane.f32.xlu0 %v173
    %v175 = vpop.xlane.xlu0 %174
    %v176 = vrot.slane %v175, 4
    %v177 = vadd.f32 %v175, %v176
    %v178 = vrot.slane %v177, 2
    %v179 = vadd.f32 %v177, %v178
    %v180 = vrot.slane %v179, 1
    %v181 = vadd.f32 %v179, %v180
    %s182 = vtos %v181
    %v183 = vstv %s182
    %v184 = vsel %vm60, %v183, 0.0
    %185 = vst [vmem:[#allocation5] sm:$0x1] %v184
    // Predicated region
    $region18: #{tpu_custom_call.1} parent=1 // pred_check
      _
    $region19: #{tpu_custom_call.1} parent=1 // pred_check_branch
      %187 = sbr.rel (0) target = $region21
    $region20: #{tpu_custom_call.1} parent=1 // pred_region
      %s189 = ssub.s32 16, 16
      %190 = vsyncadd [#allocation4], %s189
      %s192 = sshll.u32 [#allocation5], 4
      %s193 = int_to_ptr.vmem [resolvable:$true] %s192
      %195 = dma.vmem_to_hbm [thread:$0]  %s193, 16, %s3, [#allocation4]
    $region21: #{tpu_custom_call.1} parent=1 // pred_fallthru
      _
    // Predicated region
    $region22: #{tpu_custom_call.1} parent=1 // pred_check
      _
    $region23: #{tpu_custom_call.1} parent=1 // pred_check_branch
      %197 = sbr.rel (0) target = $region25
    $region24: #{tpu_custom_call.1} parent=1 // pred_region
      %198 = dma.done [#allocation4], 16
    $region25: #{tpu_custom_call.1} parent=1 // pred_fallthru
      _
    %199 = vsyncpa [#allocation3], 1
    %200 = vsyncpa [#allocation4], 1

</llo_original>
